<compile_context>
chip_gen: v6e
topology: v6e:2x2x1
jax: 0.10.0
libtpu: 0.0.40
codegen_flags: <defaults>
</compile_context>

<pallas_src>
import functools
import math

import jax
import jax.numpy as jnp
from jax.experimental import pallas as pl
from jax.experimental.pallas import tpu as pltpu


def _round_up(n, m):
    return ((n + m - 1) // m) * m


def _mean_mid_kernel(x_ref, o_ref, acc_ref, *, inv_red):
    """Reduce axis 1 of a (TP, TR, TC) block into a (TP, 1, TC) accumulator."""
    k = pl.program_id(2)

    @pl.when(k == 0)
    def _():
        acc_ref[...] = jnp.zeros_like(acc_ref)

    acc_ref[...] += jnp.sum(
        x_ref[...].astype(jnp.float32), axis=1, keepdims=True)

    @pl.when(k == pl.num_programs(2) - 1)
    def _():
        o_ref[...] = (acc_ref[...] * inv_red).astype(o_ref.dtype)


def _mean_last_kernel(x_ref, o_ref, acc_ref, *, inv_red):
    """Reduce the lane axis of a (TP, TR) block into a (TP, 1) accumulator."""
    k = pl.program_id(1)

    @pl.when(k == 0)
    def _():
        acc_ref[...] = jnp.zeros_like(acc_ref)

    acc_ref[...] += jnp.sum(
        x_ref[...].astype(jnp.float32), axis=-1, keepdims=True)

    @pl.when(k == pl.num_programs(1) - 1)
    def _():
        o_ref[...] = (acc_ref[...] * inv_red).astype(o_ref.dtype)


_FAST_PATH_ELEMS = 1 << 16  # below this, XLA's fused reduce beats any kernel


def mean_pallas(x, dim, keep_dim=False, *, force_pallas=False):
    """Mean over a single axis `dim`, computed in a Pallas TPU kernel."""
    ndim = x.ndim
    dim = dim % ndim

    pre = math.prod(x.shape[:dim]) if dim > 0 else 1
    red = x.shape[dim]
    post = math.prod(x.shape[dim + 1:]) if dim + 1 < ndim else 1

    if keep_dim:
        out_shape = x.shape[:dim] + (1,) + x.shape[dim + 1:]
    else:
        out_shape = x.shape[:dim] + x.shape[dim + 1:]

    # Degenerate / tiny / non-float cases: fused XLA reduce wins.
    if (red == 0 or pre == 0 or post == 0
            or not jnp.issubdtype(x.dtype, jnp.floating)
            or (not force_pallas and x.size < _FAST_PATH_ELEMS)):
        # TODO(synk): integer inputs fall back to jnp.mean (promotes to float),
        # unlike torch which rejects integer mean.
        return jnp.mean(x, axis=dim, keepdims=keep_dim)

    inv_red = 1.0 / red

    if post == 1:
        # ---- reduce-last-axis path: reduced axis on the 128-lane axis ----
        x2 = x.reshape(pre, red)

        tp = pre if pre <= 256 else 256        # sublane axis (mult of 8 or full)
        tr = red if red <= 1024 else 1024      # lane axis (mult of 128 or full)
        pre_p = _round_up(pre, tp)
        red_p = _round_up(red, tr)
        if (pre_p, red_p) != (pre, red):
            x2 = jnp.pad(x2, ((0, pre_p - pre), (0, red_p - red)))

        out2 = pl.pallas_call(
            functools.partial(_mean_last_kernel, inv_red=inv_red),
            out_shape=jax.ShapeDtypeStruct((pre_p, 1), x.dtype),
            grid=(pre_p // tp, red_p // tr),
            in_specs=[pl.BlockSpec((tp, tr), lambda i, k: (i, k))],
            out_specs=pl.BlockSpec((tp, 1), lambda i, k: (i, 0)),
            scratch_shapes=[pltpu.VMEM((tp, 1), jnp.float32)],
            compiler_params=pltpu.CompilerParams(
                dimension_semantics=("parallel", "arbitrary")),
        )(x2)
        return out2[:pre, 0].reshape(out_shape)

    # ---- general path: (pre, red, post), post on lanes, red accumulated ----
    x3 = x.reshape(pre, red, post)

    tp = pre if pre <= 8 else 8                # batch pre rows per step
    tr = red if red <= 256 else 256            # sublane axis (mult of 8 or full)
    tc = post if post <= 512 else 512          # lane axis (mult of 128 or full)
    pre_p = _round_up(pre, tp)
    red_p = _round_up(red, tr)
    post_p = _round_up(post, tc)
    if (pre_p, red_p, post_p) != (pre, red, post):
        x3 = jnp.pad(
            x3, ((0, pre_p - pre), (0, red_p - red), (0, post_p - post)))

    out3 = pl.pallas_call(
        functools.partial(_mean_mid_kernel, inv_red=inv_red),
        out_shape=jax.ShapeDtypeStruct((pre_p, 1, post_p), x.dtype),
        grid=(pre_p // tp, post_p // tc, red_p // tr),
        in_specs=[pl.BlockSpec((tp, tr, tc), lambda i, j, k: (i, k, j))],
        out_specs=pl.BlockSpec((tp, 1, tc), lambda i, j, k: (i, 0, j)),
        scratch_shapes=[pltpu.VMEM((tp, 1, tc), jnp.float32)],
        compiler_params=pltpu.CompilerParams(
            dimension_semantics=("parallel", "parallel", "arbitrary")),
    )(x3)
    return out3[:pre, 0, :post].reshape(out_shape)


if __name__ == "__main__":
    key = jax.random.PRNGKey(0)
    k1, k2, k3, k4, k5 = jax.random.split(key, 5)

    # 1) EncNet usage: Mean(dim=1) on (B, K, D) encoding features.
    B, K, D = 2, 8, 32
    x = jax.random.normal(k1, (B, K, D), dtype=jnp.float32)
    out = jax.block_until_ready(mean_pallas(x, dim=1, force_pallas=True))
    ref = jnp.mean(x, axis=1)
    assert out.shape == ref.shape
    assert jnp.allclose(out, ref, atol=1e-5, rtol=1e-5)

    out_kd = jax.block_until_ready(
        mean_pallas(x, dim=1, keep_dim=True, force_pallas=True))
    ref_kd = jnp.mean(x, axis=1, keepdims=True)
    assert out_kd.shape == ref_kd.shape
    assert jnp.allclose(out_kd, ref_kd, atol=1e-5, rtol=1e-5)

    # 2) NCHW input reduced over the last (width) axis -> reduce-last path.
    x4 = jax.random.normal(k2, (2, 4, 16, 16), jnp.float32)
    out4 = jax.block_until_ready(mean_pallas(x4, dim=3, force_pallas=True))
    assert jnp.allclose(out4, jnp.mean(x4, axis=3), atol=1e-5, rtol=1e-5)

    # 3) NCHW input reduced over channels -> general path with post = H*W.
    out4c = jax.block_until_ready(mean_pallas(x4, dim=1, force_pallas=True))
    assert jnp.allclose(out4c, jnp.mean(x4, axis=1), atol=1e-5, rtol=1e-5)

    # 4) General path with a multi-block reduction axis + padding.
    x5 = jax.random.normal(k3, (2, 300, 128), jnp.float32)
    out5 = jax.block_until_ready(mean_pallas(x5, dim=1, force_pallas=True))
    assert jnp.allclose(out5, jnp.mean(x5, axis=1), atol=1e-5, rtol=1e-5)

    # 5) Reduce-last path with a multi-block reduction axis + padding.
    x6 = jax.random.normal(k4, (4, 2000), jnp.float32)
    out6 = jax.block_until_ready(mean_pallas(x6, dim=-1, force_pallas=True))
    assert jnp.allclose(out6, jnp.mean(x6, axis=-1), atol=1e-5, rtol=1e-5)

    # 6) bf16 input: f32 accumulation inside the kernel.
    xb = jax.random.normal(k5, (2, 8, 32), jnp.bfloat16)
    outb = jax.block_until_ready(mean_pallas(xb, dim=1, force_pallas=True))
    refb = jnp.mean(xb.astype(jnp.float32), axis=1)
    assert jnp.allclose(outb.astype(jnp.float32), refb, atol=1e-2, rtol=0)

    print("KERNEL_OK")
</pallas_src>

<mosaic_0001>
module attributes {stable_mosaic.version = 11 : i64} {
  func.func @_mean_mid_kernel(%arg0: i32, %arg1: i32, %arg2: i32, %arg3: memref<2x8x32xf32, #tpu.memory_space<vmem>>, %arg4: memref<2x1x32xf32, #tpu.memory_space<vmem>>, %arg5: memref<2x1x32xf32, #tpu.memory_space<vmem>>) attributes {dimension_semantics = [#tpu.dimension_semantics<parallel>, #tpu.dimension_semantics<parallel>, #tpu.dimension_semantics<arbitrary>], iteration_bounds = array<i64: 1, 1, 1>, scalar_prefetch = 0 : i64, scratch_operands = 1 : i64, tpu.core_type = #tpu.core_type<tc>, window_params = [{transform_indices = @transform_0, window_bounds = array<i64: 2, 8, 32>}, {transform_indices = @transform_1, window_bounds = array<i64: 2, 1, 32>}]} {
    %c0_i32 = arith.constant 0 : i32
    %0 = arith.cmpi eq, %arg2, %c0_i32 : i32
    %1 = arith.extui %0 : i1 to i32
    %c0_i32_0 = arith.constant 0 : i32
    %2 = arith.cmpi ne, %1, %c0_i32_0 : i32
    scf.if %2 {
      %cst_11 = arith.constant 0.000000e+00 : f32
      %12 = vector.broadcast %cst_11 : f32 to vector<2x1x32xf32>
      %c0_12 = arith.constant 0 : index
      %c0_13 = arith.constant 0 : index
      %c0_14 = arith.constant 0 : index
      %13 = vector.load %arg5[%c0_12, %c0_13, %c0_14] : memref<2x1x32xf32, #tpu.memory_space<vmem>>, vector<2x1x32xf32>
      tpu.vector_store %arg5[%c0_12, %c0_13, %c0_14], %12 {strides = array<i32>} : memref<2x1x32xf32, #tpu.memory_space<vmem>>, vector<2x1x32xf32>,
    } else {
    }
    %c0 = arith.constant 0 : index
    %c0_1 = arith.constant 0 : index
    %c0_2 = arith.constant 0 : index
    %3 = vector.load %arg5[%c0, %c0_1, %c0_2] : memref<2x1x32xf32, #tpu.memory_space<vmem>>, vector<2x1x32xf32>
    %c0_3 = arith.constant 0 : index
    %c0_4 = arith.constant 0 : index
    %c0_5 = arith.constant 0 : index
    %4 = vector.load %arg3[%c0_3, %c0_4, %c0_5] : memref<2x8x32xf32, #tpu.memory_space<vmem>>, vector<2x8x32xf32>
    %cst = arith.constant dense<0.000000e+00> : vector<2x32xf32>
    %5 = vector.multi_reduction <add>, %4, %cst [1] : vector<2x8x32xf32> to vector<2x32xf32>
    %6 = vector.shape_cast %5 : vector<2x32xf32> to vector<2x1x32xf32>
    %7 = arith.addf %3, %6 : vector<2x1x32xf32>
    %c0_6 = arith.constant 0 : index
    %c0_7 = arith.constant 0 : index
    %c0_8 = arith.constant 0 : index
    %8 = vector.load %arg5[%c0_6, %c0_7, %c0_8] : memref<2x1x32xf32, #tpu.memory_space<vmem>>, vector<2x1x32xf32>
    tpu.vector_store %arg5[%c0_6, %c0_7, %c0_8], %7 {strides = array<i32>} : memref<2x1x32xf32, #tpu.memory_space<vmem>>, vector<2x1x32xf32>,
    %c0_i32_9 = arith.constant 0 : i32
    %9 = arith.cmpi eq, %arg2, %c0_i32_9 : i32
    %10 = arith.extui %9 : i1 to i32
    %c0_i32_10 = arith.constant 0 : i32
    %11 = arith.cmpi ne, %10, %c0_i32_10 : i32
    scf.if %11 {
      %c0_11 = arith.constant 0 : index
      %c0_12 = arith.constant 0 : index
      %c0_13 = arith.constant 0 : index
      %12 = vector.load %arg5[%c0_11, %c0_12, %c0_13] : memref<2x1x32xf32, #tpu.memory_space<vmem>>, vector<2x1x32xf32>
      %cst_14 = arith.constant 1.250000e-01 : f32
      %13 = vector.broadcast %cst_14 : f32 to vector<2x1x32xf32>
      %14 = arith.mulf %12, %13 : vector<2x1x32xf32>
      %c0_15 = arith.constant 0 : index
      %c0_16 = arith.constant 0 : index
      %c0_17 = arith.constant 0 : index
      %15 = vector.load %arg4[%c0_15, %c0_16, %c0_17] : memref<2x1x32xf32, #tpu.memory_space<vmem>>, vector<2x1x32xf32>
      tpu.vector_store %arg4[%c0_15, %c0_16, %c0_17], %14 {strides = array<i32>} : memref<2x1x32xf32, #tpu.memory_space<vmem>>, vector<2x1x32xf32>,
    } else {
    }
    return
  }
  func.func @transform_0(%arg0: i32, %arg1: i32, %arg2: i32) -> (i32, i32, i32) {
    %c0_i32 = arith.constant 0 : i32
    return %arg0, %arg2, %arg1 : i32, i32, i32
  }
  func.func @transform_1(%arg0: i32, %arg1: i32, %arg2: i32) -> (i32, i32, i32) {
    %c0_i32 = arith.constant 0 : i32
    %c0_i32_0 = arith.constant 0 : i32
    return %arg0, %c0_i32, %arg1 : i32, i32, i32
  }
}

</mosaic_0001>

<llo_original>
// kernel: tpu_custom_call.1
$region0: #{tpu_custom_call.1}
  #allocation0 [shape = 'u32[]', space=smem, size = 0x4, offset = 0x4, fixed_abs, tag = 'smem constant byte address 0x4 - core index']
  #allocation1 [shape = 'u32[144,128]{1,0:T(1,128)}', space=vmem, size = 0x12000, scoped, tag = 'internal scratch']
  #allocation2 [shape = 'f32[2,1,32]{2,1,0:T(1,128)}', space=vmem, size = 0x400, scoped, tag = 'scratch operand']
  %s0 = inlined_call_operand.hbm [shape: f32[2,8,32], index: 0, kind: input, shape index: {}]
  %s1 = inlined_call_operand.hbm [shape: f32[2,1,32], index: 1, kind: output, shape index: {}]
  %s2 = sld [smem:[#allocation0]]
  $region26: #{tpu_custom_call.1} parent=0
    _
  %s4 = ssub.s32 1, %s2
  %s5 = scalar_select 0, %s4, %s2
  $region1: #{tpu_custom_call.1} parent=0
    #allocation3 [shape = 'u8[8192]{0}', space=vmem, size = 0x2000, scoped, tag = 'input window, operand 0, single buffered']
    #allocation4 [shape = 's32[1]{0}', space=sflag, size = 0x4, scoped, tag = 'scoped memory for tpu_custom_call.1']
    #allocation5 [shape = 's32[1]{0}', space=sflag, size = 0x4, scoped, tag = 'scoped memory for tpu_custom_call.1']
    #allocation6 [shape = 'u8[1024]{0}', space=vmem, size = 0x400, scoped, tag = 'output window, operand 0, single buffered']
    %6 = vsyncpa [#allocation4], 0
    %7 = vsyncpa [#allocation5], 0
    // Predicated region
    $region2: #{tpu_custom_call.1} parent=1 // pred_check
      _
    $region3: #{tpu_custom_call.1} parent=1 // pred_check_branch
      %9 = sbr.rel (0) target = $region5
    $region4: #{tpu_custom_call.1} parent=1 // pred_region
      %s11 = ssub.s32 256, 256
      %12 = vsyncadd [#allocation4], %s11
      %s13 = sshll.u32 [#allocation3], 4
      %s14 = int_to_ptr.vmem [resolvable:$true] %s13
      %19 = dma.hbm_to_vmem [thread:$0]  %s0, 256, %s14, [#allocation4], 128, 128, 8
    $region5: #{tpu_custom_call.1} parent=1 // pred_fallthru
      _
    // Predicated region
    $region6: #{tpu_custom_call.1} parent=1 // pred_check
      _
    $region7: #{tpu_custom_call.1} parent=1 // pred_check_branch
      %21 = sbr.rel (0) target = $region9
    $region8: #{tpu_custom_call.1} parent=1 // pred_region
      %22 = dma.done [#allocation4], 256
    $region9: #{tpu_custom_call.1} parent=1 // pred_fallthru
      _
    %p23 = scmp.eq.s32.totalorder 0, 0
    // Predicated region
    $region10: #{tpu_custom_call.1} parent=1 // pred_check
      %p24 = pneg %p23
    $region11: #{tpu_custom_call.1} parent=1 // pred_check_branch
      %26 = sbr.rel (%p24) target = $region13
    $region12: #{tpu_custom_call.1} parent=1 // pred_region
      %vm27 = vcmask 253952
      %28 = vst.msk [vmem:[#allocation2] sm:$0x1] %vm27, 0.0
      %29 = vst.msk [vmem:[#allocation2 + $0x1] sm:$0x1] %vm27, 0.0
    $region13: #{tpu_custom_call.1} parent=1 // pred_fallthru
      _
    %v30 = vld [vmem:[#allocation2] sm:$0x1]
    %v31 = vld [vmem:[#allocation2 + $0x1] sm:$0x1]
    %v32 = vld [vmem:[#allocation3] sm:$0xff]
    %v33 = vld [vmem:[#allocation3 + $0x8] sm:$0xff]
    %vm34 = vcmask 261120
    %v35 = vsel %vm34, %v32, 0.0
    %v36 = vrot.slane %v35, 4
    %v37 = vadd.f32 %v35, %v36
    %v38 = vrot.slane %v37, 2
    %v39 = vadd.f32 %v37, %v38
    %v40 = vrot.slane %v39, 1
    %v41 = vadd.f32 %v39, %v40
    %v42 = vsel %vm34, %v33, 0.0
    %v43 = vrot.slane %v42, 4
    %v44 = vadd.f32 %v42, %v43
    %v45 = vrot.slane %v44, 2
    %v46 = vadd.f32 %v44, %v45
    %v47 = vrot.slane %v46, 1
    %v48 = vadd.f32 %v46, %v47
    %v49 = vadd.f32 %v30, %v41
    %v50 = vadd.f32 %v31, %v48
    %vm51 = vcmask 253952
    %52 = vst.msk [vmem:[#allocation2] sm:$0x1] %vm51, %v49
    %53 = vst.msk [vmem:[#allocation2 + $0x1] sm:$0x1] %vm51, %v50
    // Predicated region
    $region14: #{tpu_custom_call.1} parent=1 // pred_check
      %p54 = pneg %p23
    $region15: #{tpu_custom_call.1} parent=1 // pred_check_branch
      %56 = sbr.rel (%p54) target = $region17
    $region16: #{tpu_custom_call.1} parent=1 // pred_region
      %v57 = vld [vmem:[#allocation2] sm:$0x1]
      %v58 = vld [vmem:[#allocation2 + $0x1] sm:$0x1]
      %v59 = vmul.f32 %v57, 0.125
      %v60 = vmul.f32 %v58, 0.125
      %61 = vst.msk [vmem:[#allocation6] sm:$0x1] %vm51, %v59
      %62 = vst.msk [vmem:[#allocation6 + $0x1] sm:$0x1] %vm51, %v60
    $region17: #{tpu_custom_call.1} parent=1 // pred_fallthru
      _
    // Predicated region
    $region18: #{tpu_custom_call.1} parent=1 // pred_check
      _
    $region19: #{tpu_custom_call.1} parent=1 // pred_check_branch
      %64 = sbr.rel (0) target = $region21
    $region20: #{tpu_custom_call.1} parent=1 // pred_region
      %s66 = ssub.s32 32, 32
      %67 = vsyncadd [#allocation5], %s66
      %s68 = sshll.u32 [#allocation6], 4
      %s69 = int_to_ptr.vmem [resolvable:$true] %s68
      %74 = dma.vmem_to_hbm [thread:$0]  %s69, 32, %s1, [#allocation5], 16, 16, 1
    $region21: #{tpu_custom_call.1} parent=1 // pred_fallthru
      _
    // Predicated region
    $region22: #{tpu_custom_call.1} parent=1 // pred_check
      _
    $region23: #{tpu_custom_call.1} parent=1 // pred_check_branch
      %76 = sbr.rel (0) target = $region25
    $region24: #{tpu_custom_call.1} parent=1 // pred_region
      %77 = dma.done [#allocation5], 32
    $region25: #{tpu_custom_call.1} parent=1 // pred_fallthru
      _
    %78 = vsyncpa [#allocation4], 1
    %79 = vsyncpa [#allocation5], 1

</llo_original>
